<compile_context>
chip_gen: v7x
topology: tpu7x:2x2x1
jax: 0.10.0
libtpu: 0.0.40
codegen_flags: <defaults>
</compile_context>

<pallas_src>
import functools

import jax
import jax.numpy as jnp
from jax import lax
from jax.experimental import pallas as pl
from jax.experimental.pallas import tpu as pltpu


def _conv3x3_vpu_kernel(x_ref, wb_ref, o_ref, *, C, KH, KW, W):
    # x_ref : (N, C, H*W + pad) f32 -- NCHW input, spatial flattened, zero tail pad
    # wb_ref: (OC, C*KH*KW + 1) f32 -- weights; last column is the bias
    # o_ref : (N, OC, P) f32 with P = OH*W -- "full-width" output rows; the
    #         wrapper drops columns >= OW (they hold wrapped-row garbage).
    N = x_ref.shape[0]
    OC = wb_ref.shape[0]
    P = o_ref.shape[-1]
    CKK = C * KH * KW

    wb = wb_ref[...]                     # (OC, CKK + 1): one tiny VMEM tile
    bias_col = wb[:, CKK:CKK + 1]        # (OC, 1)

    for n in range(N):                   # N = 2: fully unrolled
        # Fold the bias into the accumulator init (lane-broadcast of (OC, 1)).
        acc = jnp.broadcast_to(bias_col, (OC, P)).astype(jnp.float32)
        for c in range(C):
            for kh in range(KH):
                for kw in range(KW):
                    t = c * KH * KW + kh * KW + kw   # weight column for this tap
                    d = kh * W + kw                  # flattened tap offset
                    # (1, P) shifted spatial slab: a static lane-offset slice of
                    # the flattened input -- no reshape, no retiling copy.
                    xs = x_ref[n, pl.ds(c, 1), pl.ds(d, P)]
                    # (OC, 1) * (1, P) -> (OC, P): one VPU broadcast-FMA updates
                    # all 6 output channels at once. No MXU fill/drain.
                    acc = acc + wb[:, t:t + 1] * xs
        o_ref[n] = acc                    # lane-dense (OC, 224) store


def tudui_forward(x_nchw, weight, bias):
    """Conv2d(3, 6, kernel_size=3, stride=1, padding=0) forward.

    x_nchw: (N, 3, H, W); weight: (6, 3, 3, 3) [OC, IC, KH, KW]; bias: (6,).
    Returns (N, 6, H-2, W-2) in NCHW, matching the PyTorch module.
    """
    N, C, H, W = x_nchw.shape
    OC, IC, KH, KW = weight.shape
    assert C == IC
    OH, OW = H - KH + 1, W - KW + 1
    P = OH * W                         # full-width output columns per image
    PAD = (KH - 1) * W + (KW - 1)      # tail pad so every tap slice stays in bounds
    CKK = C * KH * KW

    # Free bitcast reshape (no transpose) + tiny zero tail pad on the input.
    x_flat = jnp.pad(x_nchw.astype(jnp.float32).reshape(N, C, H * W),
                     ((0, 0), (0, 0), (0, PAD)))
    # Weights and bias packed into one small VMEM tile: (OC, CKK + 1).
    wb = jnp.concatenate(
        [weight.astype(jnp.float32).reshape(OC, CKK),
         bias.astype(jnp.float32).reshape(OC, 1)], axis=1)

    kernel = functools.partial(_conv3x3_vpu_kernel, C=C, KH=KH, KW=KW, W=W)

    out_full = pl.pallas_call(
        kernel,
        out_shape=jax.ShapeDtypeStruct((N, OC, P), jnp.float32),
        in_specs=[
            pl.BlockSpec(memory_space=pltpu.MemorySpace.VMEM),
            pl.BlockSpec(memory_space=pltpu.MemorySpace.VMEM),
        ],
        out_specs=pl.BlockSpec(memory_space=pltpu.MemorySpace.VMEM),
    )(x_flat, wb)
    # TODO(synk): if reused with large N/H/W, add a grid over (N, OH-blocks)
    # with BlockSpecs sized for v7x's 64 MiB VMEM and
    # dimension_semantics=("parallel", ...) so both v7x TensorCores are used.

    # (N, OC, OH*W) -> (N, OC, OH, W) is a free row-major reshape; dropping the
    # W-OW wrapped columns is the only real wrapper op (a ~9 KiB slice).
    return out_full.reshape(N, OC, OH, W)[:, :, :, :OW]


if __name__ == "__main__":
    key = jax.random.PRNGKey(0)
    kx, kw, kb = jax.random.split(key, 3)

    # Small shapes consistent with the module: batch=2, in_ch=3, spatial=16x16.
    N, C, H, W = 2, 3, 16, 16
    OC, KH, KW = 6, 3, 3

    x = jax.random.normal(kx, (N, C, H, W), dtype=jnp.float32)
    # Deterministic synthetic parameters (PyTorch-like uniform(-bound, bound)).
    fan_in = C * KH * KW
    bound = 1.0 / jnp.sqrt(jnp.float32(fan_in))
    weight = jax.random.uniform(kw, (OC, C, KH, KW), jnp.float32, -bound, bound)
    bias = jax.random.uniform(kb, (OC,), jnp.float32, -bound, bound)

    out = jax.jit(tudui_forward)(x, weight, bias)
    out = jax.block_until_ready(out)

    # Sanity check against XLA's conv (same semantics as torch Conv2d, padding=0, stride=1).
    ref = lax.conv_general_dilated(
        x, weight, window_strides=(1, 1), padding="VALID",
        dimension_numbers=("NCHW", "OIHW", "NCHW"),
        precision=lax.Precision.HIGHEST,
    ) + bias.reshape(1, OC, 1, 1)
    assert out.shape == (N, OC, H - KH + 1, W - KW + 1)
    assert jnp.allclose(out, ref, atol=1e-4, rtol=1e-4)

    print("KERNEL_OK")
</pallas_src>

<mosaic_0001>
module attributes {stable_mosaic.version = 11 : i64} {
  func.func @_conv3x3_vpu_kernel(%arg0: memref<2x3x290xf32, #tpu.memory_space<vmem>>, %arg1: memref<6x28xf32, #tpu.memory_space<vmem>>, %arg2: memref<2x6x224xf32, #tpu.memory_space<vmem>>) attributes {dimension_semantics = [], scalar_prefetch = 0 : i64, scratch_operands = 0 : i64, tpu.core_type = #tpu.core_type<tc>} {
    %c0 = arith.constant 0 : index
    %c0_0 = arith.constant 0 : index
    %0 = vector.load %arg1[%c0, %c0_0] : memref<6x28xf32, #tpu.memory_space<vmem>>, vector<6x28xf32>
    %1 = vector.extract_strided_slice %0 {offsets = [0, 27], sizes = [6, 1], strides = [1, 1]} : vector<6x28xf32> to vector<6x1xf32>
    %2 = vector.shape_cast %1 : vector<6x1xf32> to vector<6x1xf32>
    %3 = vector.broadcast %2 : vector<6x1xf32> to vector<6x224xf32>
    %c0_1 = arith.constant 0 : index
    %c0_2 = arith.constant 0 : index
    %c0_3 = arith.constant 0 : index
    %4 = vector.load %arg0[%c0_1, %c0_2, %c0_3] : memref<2x3x290xf32, #tpu.memory_space<vmem>>, vector<1x1x224xf32>
    %5 = vector.shape_cast %4 : vector<1x1x224xf32> to vector<1x224xf32>
    %6 = vector.extract_strided_slice %0 {offsets = [0, 0], sizes = [6, 1], strides = [1, 1]} : vector<6x28xf32> to vector<6x1xf32>
    %7 = vector.broadcast %6 : vector<6x1xf32> to vector<6x224xf32>
    %8 = vector.broadcast %5 : vector<1x224xf32> to vector<6x224xf32>
    %9 = arith.mulf %7, %8 : vector<6x224xf32>
    %10 = arith.addf %3, %9 : vector<6x224xf32>
    %c0_4 = arith.constant 0 : index
    %c0_5 = arith.constant 0 : index
    %c1 = arith.constant 1 : index
    %11 = vector.load %arg0[%c0_4, %c0_5, %c1] : memref<2x3x290xf32, #tpu.memory_space<vmem>>, vector<1x1x224xf32>
    %12 = vector.shape_cast %11 : vector<1x1x224xf32> to vector<1x224xf32>
    %13 = vector.extract_strided_slice %0 {offsets = [0, 1], sizes = [6, 1], strides = [1, 1]} : vector<6x28xf32> to vector<6x1xf32>
    %14 = vector.broadcast %13 : vector<6x1xf32> to vector<6x224xf32>
    %15 = vector.broadcast %12 : vector<1x224xf32> to vector<6x224xf32>
    %16 = arith.mulf %14, %15 : vector<6x224xf32>
    %17 = arith.addf %10, %16 : vector<6x224xf32>
    %c0_6 = arith.constant 0 : index
    %c0_7 = arith.constant 0 : index
    %c2 = arith.constant 2 : index
    %18 = vector.load %arg0[%c0_6, %c0_7, %c2] : memref<2x3x290xf32, #tpu.memory_space<vmem>>, vector<1x1x224xf32>
    %19 = vector.shape_cast %18 : vector<1x1x224xf32> to vector<1x224xf32>
    %20 = vector.extract_strided_slice %0 {offsets = [0, 2], sizes = [6, 1], strides = [1, 1]} : vector<6x28xf32> to vector<6x1xf32>
    %21 = vector.broadcast %20 : vector<6x1xf32> to vector<6x224xf32>
    %22 = vector.broadcast %19 : vector<1x224xf32> to vector<6x224xf32>
    %23 = arith.mulf %21, %22 : vector<6x224xf32>
    %24 = arith.addf %17, %23 : vector<6x224xf32>
    %c0_8 = arith.constant 0 : index
    %c0_9 = arith.constant 0 : index
    %c16 = arith.constant 16 : index
    %25 = vector.load %arg0[%c0_8, %c0_9, %c16] : memref<2x3x290xf32, #tpu.memory_space<vmem>>, vector<1x1x224xf32>
    %26 = vector.shape_cast %25 : vector<1x1x224xf32> to vector<1x224xf32>
    %27 = vector.extract_strided_slice %0 {offsets = [0, 3], sizes = [6, 1], strides = [1, 1]} : vector<6x28xf32> to vector<6x1xf32>
    %28 = vector.broadcast %27 : vector<6x1xf32> to vector<6x224xf32>
    %29 = vector.broadcast %26 : vector<1x224xf32> to vector<6x224xf32>
    %30 = arith.mulf %28, %29 : vector<6x224xf32>
    %31 = arith.addf %24, %30 : vector<6x224xf32>
    %c0_10 = arith.constant 0 : index
    %c0_11 = arith.constant 0 : index
    %c17 = arith.constant 17 : index
    %32 = vector.load %arg0[%c0_10, %c0_11, %c17] : memref<2x3x290xf32, #tpu.memory_space<vmem>>, vector<1x1x224xf32>
    %33 = vector.shape_cast %32 : vector<1x1x224xf32> to vector<1x224xf32>
    %34 = vector.extract_strided_slice %0 {offsets = [0, 4], sizes = [6, 1], strides = [1, 1]} : vector<6x28xf32> to vector<6x1xf32>
    %35 = vector.broadcast %34 : vector<6x1xf32> to vector<6x224xf32>
    %36 = vector.broadcast %33 : vector<1x224xf32> to vector<6x224xf32>
    %37 = arith.mulf %35, %36 : vector<6x224xf32>
    %38 = arith.addf %31, %37 : vector<6x224xf32>
    %c0_12 = arith.constant 0 : index
    %c0_13 = arith.constant 0 : index
    %c18 = arith.constant 18 : index
    %39 = vector.load %arg0[%c0_12, %c0_13, %c18] : memref<2x3x290xf32, #tpu.memory_space<vmem>>, vector<1x1x224xf32>
    %40 = vector.shape_cast %39 : vector<1x1x224xf32> to vector<1x224xf32>
    %41 = vector.extract_strided_slice %0 {offsets = [0, 5], sizes = [6, 1], strides = [1, 1]} : vector<6x28xf32> to vector<6x1xf32>
    %42 = vector.broadcast %41 : vector<6x1xf32> to vector<6x224xf32>
    %43 = vector.broadcast %40 : vector<1x224xf32> to vector<6x224xf32>
    %44 = arith.mulf %42, %43 : vector<6x224xf32>
    %45 = arith.addf %38, %44 : vector<6x224xf32>
    %c0_14 = arith.constant 0 : index
    %c0_15 = arith.constant 0 : index
    %c32 = arith.constant 32 : index
    %46 = vector.load %arg0[%c0_14, %c0_15, %c32] : memref<2x3x290xf32, #tpu.memory_space<vmem>>, vector<1x1x224xf32>
    %47 = vector.shape_cast %46 : vector<1x1x224xf32> to vector<1x224xf32>
    %48 = vector.extract_strided_slice %0 {offsets = [0, 6], sizes = [6, 1], strides = [1, 1]} : vector<6x28xf32> to vector<6x1xf32>
    %49 = vector.broadcast %48 : vector<6x1xf32> to vector<6x224xf32>
    %50 = vector.broadcast %47 : vector<1x224xf32> to vector<6x224xf32>
    %51 = arith.mulf %49, %50 : vector<6x224xf32>
    %52 = arith.addf %45, %51 : vector<6x224xf32>
    %c0_16 = arith.constant 0 : index
    %c0_17 = arith.constant 0 : index
    %c33 = arith.constant 33 : index
    %53 = vector.load %arg0[%c0_16, %c0_17, %c33] : memref<2x3x290xf32, #tpu.memory_space<vmem>>, vector<1x1x224xf32>
    %54 = vector.shape_cast %53 : vector<1x1x224xf32> to vector<1x224xf32>
    %55 = vector.extract_strided_slice %0 {offsets = [0, 7], sizes = [6, 1], strides = [1, 1]} : vector<6x28xf32> to vector<6x1xf32>
    %56 = vector.broadcast %55 : vector<6x1xf32> to vector<6x224xf32>
    %57 = vector.broadcast %54 : vector<1x224xf32> to vector<6x224xf32>
    %58 = arith.mulf %56, %57 : vector<6x224xf32>
    %59 = arith.addf %52, %58 : vector<6x224xf32>
    %c0_18 = arith.constant 0 : index
    %c0_19 = arith.constant 0 : index
    %c34 = arith.constant 34 : index
    %60 = vector.load %arg0[%c0_18, %c0_19, %c34] : memref<2x3x290xf32, #tpu.memory_space<vmem>>, vector<1x1x224xf32>
    %61 = vector.shape_cast %60 : vector<1x1x224xf32> to vector<1x224xf32>
    %62 = vector.extract_strided_slice %0 {offsets = [0, 8], sizes = [6, 1], strides = [1, 1]} : vector<6x28xf32> to vector<6x1xf32>
    %63 = vector.broadcast %62 : vector<6x1xf32> to vector<6x224xf32>
    %64 = vector.broadcast %61 : vector<1x224xf32> to vector<6x224xf32>
    %65 = arith.mulf %63, %64 : vector<6x224xf32>
    %66 = arith.addf %59, %65 : vector<6x224xf32>
    %c0_20 = arith.constant 0 : index
    %c1_21 = arith.constant 1 : index
    %c0_22 = arith.constant 0 : index
    %67 = vector.load %arg0[%c0_20, %c1_21, %c0_22] : memref<2x3x290xf32, #tpu.memory_space<vmem>>, vector<1x1x224xf32>
    %68 = vector.shape_cast %67 : vector<1x1x224xf32> to vector<1x224xf32>
    %69 = vector.extract_strided_slice %0 {offsets = [0, 9], sizes = [6, 1], strides = [1, 1]} : vector<6x28xf32> to vector<6x1xf32>
    %70 = vector.broadcast %69 : vector<6x1xf32> to vector<6x224xf32>
    %71 = vector.broadcast %68 : vector<1x224xf32> to vector<6x224xf32>
    %72 = arith.mulf %70, %71 : vector<6x224xf32>
    %73 = arith.addf %66, %72 : vector<6x224xf32>
    %c0_23 = arith.constant 0 : index
    %c1_24 = arith.constant 1 : index
    %c1_25 = arith.constant 1 : index
    %74 = vector.load %arg0[%c0_23, %c1_24, %c1_25] : memref<2x3x290xf32, #tpu.memory_space<vmem>>, vector<1x1x224xf32>
    %75 = vector.shape_cast %74 : vector<1x1x224xf32> to vector<1x224xf32>
    %76 = vector.extract_strided_slice %0 {offsets = [0, 10], sizes = [6, 1], strides = [1, 1]} : vector<6x28xf32> to vector<6x1xf32>
    %77 = vector.broadcast %76 : vector<6x1xf32> to vector<6x224xf32>
    %78 = vector.broadcast %75 : vector<1x224xf32> to vector<6x224xf32>
    %79 = arith.mulf %77, %78 : vector<6x224xf32>
    %80 = arith.addf %73, %79 : vector<6x224xf32>
    %c0_26 = arith.constant 0 : index
    %c1_27 = arith.constant 1 : index
    %c2_28 = arith.constant 2 : index
    %81 = vector.load %arg0[%c0_26, %c1_27, %c2_28] : memref<2x3x290xf32, #tpu.memory_space<vmem>>, vector<1x1x224xf32>
    %82 = vector.shape_cast %81 : vector<1x1x224xf32> to vector<1x224xf32>
    %83 = vector.extract_strided_slice %0 {offsets = [0, 11], sizes = [6, 1], strides = [1, 1]} : vector<6x28xf32> to vector<6x1xf32>
    %84 = vector.broadcast %83 : vector<6x1xf32> to vector<6x224xf32>
    %85 = vector.broadcast %82 : vector<1x224xf32> to vector<6x224xf32>
    %86 = arith.mulf %84, %85 : vector<6x224xf32>
    %87 = arith.addf %80, %86 : vector<6x224xf32>
    %c0_29 = arith.constant 0 : index
    %c1_30 = arith.constant 1 : index
    %c16_31 = arith.constant 16 : index
    %88 = vector.load %arg0[%c0_29, %c1_30, %c16_31] : memref<2x3x290xf32, #tpu.memory_space<vmem>>, vector<1x1x224xf32>
    %89 = vector.shape_cast %88 : vector<1x1x224xf32> to vector<1x224xf32>
    %90 = vector.extract_strided_slice %0 {offsets = [0, 12], sizes = [6, 1], strides = [1, 1]} : vector<6x28xf32> to vector<6x1xf32>
    %91 = vector.broadcast %90 : vector<6x1xf32> to vector<6x224xf32>
    %92 = vector.broadcast %89 : vector<1x224xf32> to vector<6x224xf32>
    %93 = arith.mulf %91, %92 : vector<6x224xf32>
    %94 = arith.addf %87, %93 : vector<6x224xf32>
    %c0_32 = arith.constant 0 : index
    %c1_33 = arith.constant 1 : index
    %c17_34 = arith.constant 17 : index
    %95 = vector.load %arg0[%c0_32, %c1_33, %c17_34] : memref<2x3x290xf32, #tpu.memory_space<vmem>>, vector<1x1x224xf32>
    %96 = vector.shape_cast %95 : vector<1x1x224xf32> to vector<1x224xf32>
    %97 = vector.extract_strided_slice %0 {offsets = [0, 13], sizes = [6, 1], strides = [1, 1]} : vector<6x28xf32> to vector<6x1xf32>
    %98 = vector.broadcast %97 : vector<6x1xf32> to vector<6x224xf32>
    %99 = vector.broadcast %96 : vector<1x224xf32> to vector<6x224xf32>
    %100 = arith.mulf %98, %99 : vector<6x224xf32>
    %101 = arith.addf %94, %100 : vector<6x224xf32>
    %c0_35 = arith.constant 0 : index
    %c1_36 = arith.constant 1 : index
    %c18_37 = arith.constant 18 : index
    %102 = vector.load %arg0[%c0_35, %c1_36, %c18_37] : memref<2x3x290xf32, #tpu.memory_space<vmem>>, vector<1x1x224xf32>
    %103 = vector.shape_cast %102 : vector<1x1x224xf32> to vector<1x224xf32>
    %104 = vector.extract_strided_slice %0 {offsets = [0, 14], sizes = [6, 1], strides = [1, 1]} : vector<6x28xf32> to vector<6x1xf32>
    %105 = vector.broadcast %104 : vector<6x1xf32> to vector<6x224xf32>
    %106 = vector.broadcast %103 : vector<1x224xf32> to vector<6x224xf32>
    %107 = arith.mulf %105, %106 : vector<6x224xf32>
    %108 = arith.addf %101, %107 : vector<6x224xf32>
    %c0_38 = arith.constant 0 : index
    %c1_39 = arith.constant 1 : index
    %c32_40 = arith.constant 32 : index
    %109 = vector.load %arg0[%c0_38, %c1_39, %c32_40] : memref<2x3x290xf32, #tpu.memory_space<vmem>>, vector<1x1x224xf32>
    %110 = vector.shape_cast %109 : vector<1x1x224xf32> to vector<1x224xf32>
    %111 = vector.extract_strided_slice %0 {offsets = [0, 15], sizes = [6, 1], strides = [1, 1]} : vector<6x28xf32> to vector<6x1xf32>
    %112 = vector.broadcast %111 : vector<6x1xf32> to vector<6x224xf32>
    %113 = vector.broadcast %110 : vector<1x224xf32> to vector<6x224xf32>
    %114 = arith.mulf %112, %113 : vector<6x224xf32>
    %115 = arith.addf %108, %114 : vector<6x224xf32>
    %c0_41 = arith.constant 0 : index
    %c1_42 = arith.constant 1 : index
    %c33_43 = arith.constant 33 : index
    %116 = vector.load %arg0[%c0_41, %c1_42, %c33_43] : memref<2x3x290xf32, #tpu.memory_space<vmem>>, vector<1x1x224xf32>
    %117 = vector.shape_cast %116 : vector<1x1x224xf32> to vector<1x224xf32>
    %118 = vector.extract_strided_slice %0 {offsets = [0, 16], sizes = [6, 1], strides = [1, 1]} : vector<6x28xf32> to vector<6x1xf32>
    %119 = vector.broadcast %118 : vector<6x1xf32> to vector<6x224xf32>
    %120 = vector.broadcast %117 : vector<1x224xf32> to vector<6x224xf32>
    %121 = arith.mulf %119, %120 : vector<6x224xf32>
    %122 = arith.addf %115, %121 : vector<6x224xf32>
    %c0_44 = arith.constant 0 : index
    %c1_45 = arith.constant 1 : index
    %c34_46 = arith.constant 34 : index
    %123 = vector.load %arg0[%c0_44, %c1_45, %c34_46] : memref<2x3x290xf32, #tpu.memory_space<vmem>>, vector<1x1x224xf32>
    %124 = vector.shape_cast %123 : vector<1x1x224xf32> to vector<1x224xf32>
    %125 = vector.extract_strided_slice %0 {offsets = [0, 17], sizes = [6, 1], strides = [1, 1]} : vector<6x28xf32> to vector<6x1xf32>
    %126 = vector.broadcast %125 : vector<6x1xf32> to vector<6x224xf32>
    %127 = vector.broadcast %124 : vector<1x224xf32> to vector<6x224xf32>
    %128 = arith.mulf %126, %127 : vector<6x224xf32>
    %129 = arith.addf %122, %128 : vector<6x224xf32>
    %c0_47 = arith.constant 0 : index
    %c2_48 = arith.constant 2 : index
    %c0_49 = arith.constant 0 : index
    %130 = vector.load %arg0[%c0_47, %c2_48, %c0_49] : memref<2x3x290xf32, #tpu.memory_space<vmem>>, vector<1x1x224xf32>
    %131 = vector.shape_cast %130 : vector<1x1x224xf32> to vector<1x224xf32>
    %132 = vector.extract_strided_slice %0 {offsets = [0, 18], sizes = [6, 1], strides = [1, 1]} : vector<6x28xf32> to vector<6x1xf32>
    %133 = vector.broadcast %132 : vector<6x1xf32> to vector<6x224xf32>
    %134 = vector.broadcast %131 : vector<1x224xf32> to vector<6x224xf32>
    %135 = arith.mulf %133, %134 : vector<6x224xf32>
    %136 = arith.addf %129, %135 : vector<6x224xf32>
    %c0_50 = arith.constant 0 : index
    %c2_51 = arith.constant 2 : index
    %c1_52 = arith.constant 1 : index
    %137 = vector.load %arg0[%c0_50, %c2_51, %c1_52] : memref<2x3x290xf32, #tpu.memory_space<vmem>>, vector<1x1x224xf32>
    %138 = vector.shape_cast %137 : vector<1x1x224xf32> to vector<1x224xf32>
    %139 = vector.extract_strided_slice %0 {offsets = [0, 19], sizes = [6, 1], strides = [1, 1]} : vector<6x28xf32> to vector<6x1xf32>
    %140 = vector.broadcast %139 : vector<6x1xf32> to vector<6x224xf32>
    %141 = vector.broadcast %138 : vector<1x224xf32> to vector<6x224xf32>
    %142 = arith.mulf %140, %141 : vector<6x224xf32>
    %143 = arith.addf %136, %142 : vector<6x224xf32>
    %c0_53 = arith.constant 0 : index
    %c2_54 = arith.constant 2 : index
    %c2_55 = arith.constant 2 : index
    %144 = vector.load %arg0[%c0_53, %c2_54, %c2_55] : memref<2x3x290xf32, #tpu.memory_space<vmem>>, vector<1x1x224xf32>
    %145 = vector.shape_cast %144 : vector<1x1x224xf32> to vector<1x224xf32>
    %146 = vector.extract_strided_slice %0 {offsets = [0, 20], sizes = [6, 1], strides = [1, 1]} : vector<6x28xf32> to vector<6x1xf32>
    %147 = vector.broadcast %146 : vector<6x1xf32> to vector<6x224xf32>
    %148 = vector.broadcast %145 : vector<1x224xf32> to vector<6x224xf32>
    %149 = arith.mulf %147, %148 : vector<6x224xf32>
    %150 = arith.addf %143, %149 : vector<6x224xf32>
    %c0_56 = arith.constant 0 : index
    %c2_57 = arith.constant 2 : index
    %c16_58 = arith.constant 16 : index
    %151 = vector.load %arg0[%c0_56, %c2_57, %c16_58] : memref<2x3x290xf32, #tpu.memory_space<vmem>>, vector<1x1x224xf32>
    %152 = vector.shape_cast %151 : vector<1x1x224xf32> to vector<1x224xf32>
    %153 = vector.extract_strided_slice %0 {offsets = [0, 21], sizes = [6, 1], strides = [1, 1]} : vector<6x28xf32> to vector<6x1xf32>
    %154 = vector.broadcast %153 : vector<6x1xf32> to vector<6x224xf32>
    %155 = vector.broadcast %152 : vector<1x224xf32> to vector<6x224xf32>
    %156 = arith.mulf %154, %155 : vector<6x224xf32>
    %157 = arith.addf %150, %156 : vector<6x224xf32>
    %c0_59 = arith.constant 0 : index
    %c2_60 = arith.constant 2 : index
    %c17_61 = arith.constant 17 : index
    %158 = vector.load %arg0[%c0_59, %c2_60, %c17_61] : memref<2x3x290xf32, #tpu.memory_space<vmem>>, vector<1x1x224xf32>
    %159 = vector.shape_cast %158 : vector<1x1x224xf32> to vector<1x224xf32>
    %160 = vector.extract_strided_slice %0 {offsets = [0, 22], sizes = [6, 1], strides = [1, 1]} : vector<6x28xf32> to vector<6x1xf32>
    %161 = vector.broadcast %160 : vector<6x1xf32> to vector<6x224xf32>
    %162 = vector.broadcast %159 : vector<1x224xf32> to vector<6x224xf32>
    %163 = arith.mulf %161, %162 : vector<6x224xf32>
    %164 = arith.addf %157, %163 : vector<6x224xf32>
    %c0_62 = arith.constant 0 : index
    %c2_63 = arith.constant 2 : index
    %c18_64 = arith.constant 18 : index
    %165 = vector.load %arg0[%c0_62, %c2_63, %c18_64] : memref<2x3x290xf32, #tpu.memory_space<vmem>>, vector<1x1x224xf32>
    %166 = vector.shape_cast %165 : vector<1x1x224xf32> to vector<1x224xf32>
    %167 = vector.extract_strided_slice %0 {offsets = [0, 23], sizes = [6, 1], strides = [1, 1]} : vector<6x28xf32> to vector<6x1xf32>
    %168 = vector.broadcast %167 : vector<6x1xf32> to vector<6x224xf32>
    %169 = vector.broadcast %166 : vector<1x224xf32> to vector<6x224xf32>
    %170 = arith.mulf %168, %169 : vector<6x224xf32>
    %171 = arith.addf %164, %170 : vector<6x224xf32>
    %c0_65 = arith.constant 0 : index
    %c2_66 = arith.constant 2 : index
    %c32_67 = arith.constant 32 : index
    %172 = vector.load %arg0[%c0_65, %c2_66, %c32_67] : memref<2x3x290xf32, #tpu.memory_space<vmem>>, vector<1x1x224xf32>
    %173 = vector.shape_cast %172 : vector<1x1x224xf32> to vector<1x224xf32>
    %174 = vector.extract_strided_slice %0 {offsets = [0, 24], sizes = [6, 1], strides = [1, 1]} : vector<6x28xf32> to vector<6x1xf32>
    %175 = vector.broadcast %174 : vector<6x1xf32> to vector<6x224xf32>
    %176 = vector.broadcast %173 : vector<1x224xf32> to vector<6x224xf32>
    %177 = arith.mulf %175, %176 : vector<6x224xf32>
    %178 = arith.addf %171, %177 : vector<6x224xf32>
    %c0_68 = arith.constant 0 : index
    %c2_69 = arith.constant 2 : index
    %c33_70 = arith.constant 33 : index
    %179 = vector.load %arg0[%c0_68, %c2_69, %c33_70] : memref<2x3x290xf32, #tpu.memory_space<vmem>>, vector<1x1x224xf32>
    %180 = vector.shape_cast %179 : vector<1x1x224xf32> to vector<1x224xf32>
    %181 = vector.extract_strided_slice %0 {offsets = [0, 25], sizes = [6, 1], strides = [1, 1]} : vector<6x28xf32> to vector<6x1xf32>
    %182 = vector.broadcast %181 : vector<6x1xf32> to vector<6x224xf32>
    %183 = vector.broadcast %180 : vector<1x224xf32> to vector<6x224xf32>
    %184 = arith.mulf %182, %183 : vector<6x224xf32>
    %185 = arith.addf %178, %184 : vector<6x224xf32>
    %c0_71 = arith.constant 0 : index
    %c2_72 = arith.constant 2 : index
    %c34_73 = arith.constant 34 : index
    %186 = vector.load %arg0[%c0_71, %c2_72, %c34_73] : memref<2x3x290xf32, #tpu.memory_space<vmem>>, vector<1x1x224xf32>
    %187 = vector.shape_cast %186 : vector<1x1x224xf32> to vector<1x224xf32>
    %188 = vector.extract_strided_slice %0 {offsets = [0, 26], sizes = [6, 1], strides = [1, 1]} : vector<6x28xf32> to vector<6x1xf32>
    %189 = vector.broadcast %188 : vector<6x1xf32> to vector<6x224xf32>
    %190 = vector.broadcast %187 : vector<1x224xf32> to vector<6x224xf32>
    %191 = arith.mulf %189, %190 : vector<6x224xf32>
    %192 = arith.addf %185, %191 : vector<6x224xf32>
    %c0_74 = arith.constant 0 : index
    %c0_75 = arith.constant 0 : index
    %c0_76 = arith.constant 0 : index
    %193 = vector.load %arg2[%c0_74, %c0_75, %c0_76] : memref<2x6x224xf32, #tpu.memory_space<vmem>>, vector<1x6x224xf32>
    %194 = vector.shape_cast %193 : vector<1x6x224xf32> to vector<6x224xf32>
    %195 = vector.shape_cast %192 : vector<6x224xf32> to vector<1x6x224xf32>
    tpu.vector_store %arg2[%c0_74, %c0_75, %c0_76], %195 {strides = array<i32>} : memref<2x6x224xf32, #tpu.memory_space<vmem>>, vector<1x6x224xf32>,
    %196 = vector.shape_cast %1 : vector<6x1xf32> to vector<6x1xf32>
    %197 = vector.broadcast %196 : vector<6x1xf32> to vector<6x224xf32>
    %c1_77 = arith.constant 1 : index
    %c0_78 = arith.constant 0 : index
    %c0_79 = arith.constant 0 : index
    %198 = vector.load %arg0[%c1_77, %c0_78, %c0_79] : memref<2x3x290xf32, #tpu.memory_space<vmem>>, vector<1x1x224xf32>
    %199 = vector.shape_cast %198 : vector<1x1x224xf32> to vector<1x224xf32>
    %200 = vector.extract_strided_slice %0 {offsets = [0, 0], sizes = [6, 1], strides = [1, 1]} : vector<6x28xf32> to vector<6x1xf32>
    %201 = vector.broadcast %200 : vector<6x1xf32> to vector<6x224xf32>
    %202 = vector.broadcast %199 : vector<1x224xf32> to vector<6x224xf32>
    %203 = arith.mulf %201, %202 : vector<6x224xf32>
    %204 = arith.addf %197, %203 : vector<6x224xf32>
    %c1_80 = arith.constant 1 : index
    %c0_81 = arith.constant 0 : index
    %c1_82 = arith.constant 1 : index
    %205 = vector.load %arg0[%c1_80, %c0_81, %c1_82] : memref<2x3x290xf32, #tpu.memory_space<vmem>>, vector<1x1x224xf32>
    %206 = vector.shape_cast %205 : vector<1x1x224xf32> to vector<1x224xf32>
    %207 = vector.extract_strided_slice %0 {offsets = [0, 1], sizes = [6, 1], strides = [1, 1]} : vector<6x28xf32> to vector<6x1xf32>
    %208 = vector.broadcast %207 : vector<6x1xf32> to vector<6x224xf32>
    %209 = vector.broadcast %206 : vector<1x224xf32> to vector<6x224xf32>
    %210 = arith.mulf %208, %209 : vector<6x224xf32>
    %211 = arith.addf %204, %210 : vector<6x224xf32>
    %c1_83 = arith.constant 1 : index
    %c0_84 = arith.constant 0 : index
    %c2_85 = arith.constant 2 : index
    %212 = vector.load %arg0[%c1_83, %c0_84, %c2_85] : memref<2x3x290xf32, #tpu.memory_space<vmem>>, vector<1x1x224xf32>
    %213 = vector.shape_cast %212 : vector<1x1x224xf32> to vector<1x224xf32>
    %214 = vector.extract_strided_slice %0 {offsets = [0, 2], sizes = [6, 1], strides = [1, 1]} : vector<6x28xf32> to vector<6x1xf32>
    %215 = vector.broadcast %214 : vector<6x1xf32> to vector<6x224xf32>
    %216 = vector.broadcast %213 : vector<1x224xf32> to vector<6x224xf32>
    %217 = arith.mulf %215, %216 : vector<6x224xf32>
    %218 = arith.addf %211, %217 : vector<6x224xf32>
    %c1_86 = arith.constant 1 : index
    %c0_87 = arith.constant 0 : index
    %c16_88 = arith.constant 16 : index
    %219 = vector.load %arg0[%c1_86, %c0_87, %c16_88] : memref<2x3x290xf32, #tpu.memory_space<vmem>>, vector<1x1x224xf32>
    %220 = vector.shape_cast %219 : vector<1x1x224xf32> to vector<1x224xf32>
    %221 = vector.extract_strided_slice %0 {offsets = [0, 3], sizes = [6, 1], strides = [1, 1]} : vector<6x28xf32> to vector<6x1xf32>
    %222 = vector.broadcast %221 : vector<6x1xf32> to vector<6x224xf32>
    %223 = vector.broadcast %220 : vector<1x224xf32> to vector<6x224xf32>
    %224 = arith.mulf %222, %223 : vector<6x224xf32>
    %225 = arith.addf %218, %224 : vector<6x224xf32>
    %c1_89 = arith.constant 1 : index
    %c0_90 = arith.constant 0 : index
    %c17_91 = arith.constant 17 : index
    %226 = vector.load %arg0[%c1_89, %c0_90, %c17_91] : memref<2x3x290xf32, #tpu.memory_space<vmem>>, vector<1x1x224xf32>
    %227 = vector.shape_cast %226 : vector<1x1x224xf32> to vector<1x224xf32>
    %228 = vector.extract_strided_slice %0 {offsets = [0, 4], sizes = [6, 1], strides = [1, 1]} : vector<6x28xf32> to vector<6x1xf32>
    %229 = vector.broadcast %228 : vector<6x1xf32> to vector<6x224xf32>
    %230 = vector.broadcast %227 : vector<1x224xf32> to vector<6x224xf32>
    %231 = arith.mulf %229, %230 : vector<6x224xf32>
    %232 = arith.addf %225, %231 : vector<6x224xf32>
    %c1_92 = arith.constant 1 : index
    %c0_93 = arith.constant 0 : index
    %c18_94 = arith.constant 18 : index
    %233 = vector.load %arg0[%c1_92, %c0_93, %c18_94] : memref<2x3x290xf32, #tpu.memory_space<vmem>>, vector<1x1x224xf32>
    %234 = vector.shape_cast %233 : vector<1x1x224xf32> to vector<1x224xf32>
    %235 = vector.extract_strided_slice %0 {offsets = [0, 5], sizes = [6, 1], strides = [1, 1]} : vector<6x28xf32> to vector<6x1xf32>
    %236 = vector.broadcast %235 : vector<6x1xf32> to vector<6x224xf32>
    %237 = vector.broadcast %234 : vector<1x224xf32> to vector<6x224xf32>
    %238 = arith.mulf %236, %237 : vector<6x224xf32>
    %239 = arith.addf %232, %238 : vector<6x224xf32>
    %c1_95 = arith.constant 1 : index
    %c0_96 = arith.constant 0 : index
    %c32_97 = arith.constant 32 : index
    %240 = vector.load %arg0[%c1_95, %c0_96, %c32_97] : memref<2x3x290xf32, #tpu.memory_space<vmem>>, vector<1x1x224xf32>
    %241 = vector.shape_cast %240 : vector<1x1x224xf32> to vector<1x224xf32>
    %242 = vector.extract_strided_slice %0 {offsets = [0, 6], sizes = [6, 1], strides = [1, 1]} : vector<6x28xf32> to vector<6x1xf32>
    %243 = vector.broadcast %242 : vector<6x1xf32> to vector<6x224xf32>
    %244 = vector.broadcast %241 : vector<1x224xf32> to vector<6x224xf32>
    %245 = arith.mulf %243, %244 : vector<6x224xf32>
    %246 = arith.addf %239, %245 : vector<6x224xf32>
    %c1_98 = arith.constant 1 : index
    %c0_99 = arith.constant 0 : index
    %c33_100 = arith.constant 33 : index
    %247 = vector.load %arg0[%c1_98, %c0_99, %c33_100] : memref<2x3x290xf32, #tpu.memory_space<vmem>>, vector<1x1x224xf32>
    %248 = vector.shape_cast %247 : vector<1x1x224xf32> to vector<1x224xf32>
    %249 = vector.extract_strided_slice %0 {offsets = [0, 7], sizes = [6, 1], strides = [1, 1]} : vector<6x28xf32> to vector<6x1xf32>
    %250 = vector.broadcast %249 : vector<6x1xf32> to vector<6x224xf32>
    %251 = vector.broadcast %248 : vector<1x224xf32> to vector<6x224xf32>
    %252 = arith.mulf %250, %251 : vector<6x224xf32>
    %253 = arith.addf %246, %252 : vector<6x224xf32>
    %c1_101 = arith.constant 1 : index
    %c0_102 = arith.constant 0 : index
    %c34_103 = arith.constant 34 : index
    %254 = vector.load %arg0[%c1_101, %c0_102, %c34_103] : memref<2x3x290xf32, #tpu.memory_space<vmem>>, vector<1x1x224xf32>
    %255 = vector.shape_cast %254 : vector<1x1x224xf32> to vector<1x224xf32>
    %256 = vector.extract_strided_slice %0 {offsets = [0, 8], sizes = [6, 1], strides = [1, 1]} : vector<6x28xf32> to vector<6x1xf32>
    %257 = vector.broadcast %256 : vector<6x1xf32> to vector<6x224xf32>
    %258 = vector.broadcast %255 : vector<1x224xf32> to vector<6x224xf32>
    %259 = arith.mulf %257, %258 : vector<6x224xf32>
    %260 = arith.addf %253, %259 : vector<6x224xf32>
    %c1_104 = arith.constant 1 : index
    %c1_105 = arith.constant 1 : index
    %c0_106 = arith.constant 0 : index
    %261 = vector.load %arg0[%c1_104, %c1_105, %c0_106] : memref<2x3x290xf32, #tpu.memory_space<vmem>>, vector<1x1x224xf32>
    %262 = vector.shape_cast %261 : vector<1x1x224xf32> to vector<1x224xf32>
    %263 = vector.extract_strided_slice %0 {offsets = [0, 9], sizes = [6, 1], strides = [1, 1]} : vector<6x28xf32> to vector<6x1xf32>
    %264 = vector.broadcast %263 : vector<6x1xf32> to vector<6x224xf32>
    %265 = vector.broadcast %262 : vector<1x224xf32> to vector<6x224xf32>
    %266 = arith.mulf %264, %265 : vector<6x224xf32>
    %267 = arith.addf %260, %266 : vector<6x224xf32>
    %c1_107 = arith.constant 1 : index
    %c1_108 = arith.constant 1 : index
    %c1_109 = arith.constant 1 : index
    %268 = vector.load %arg0[%c1_107, %c1_108, %c1_109] : memref<2x3x290xf32, #tpu.memory_space<vmem>>, vector<1x1x224xf32>
    %269 = vector.shape_cast %268 : vector<1x1x224xf32> to vector<1x224xf32>
    %270 = vector.extract_strided_slice %0 {offsets = [0, 10], sizes = [6, 1], strides = [1, 1]} : vector<6x28xf32> to vector<6x1xf32>
    %271 = vector.broadcast %270 : vector<6x1xf32> to vector<6x224xf32>
    %272 = vector.broadcast %269 : vector<1x224xf32> to vector<6x224xf32>
    %273 = arith.mulf %271, %272 : vector<6x224xf32>
    %274 = arith.addf %267, %273 : vector<6x224xf32>
    %c1_110 = arith.constant 1 : index
    %c1_111 = arith.constant 1 : index
    %c2_112 = arith.constant 2 : index
    %275 = vector.load %arg0[%c1_110, %c1_111, %c2_112] : memref<2x3x290xf32, #tpu.memory_space<vmem>>, vector<1x1x224xf32>
    %276 = vector.shape_cast %275 : vector<1x1x224xf32> to vector<1x224xf32>
    %277 = vector.extract_strided_slice %0 {offsets = [0, 11], sizes = [6, 1], strides = [1, 1]} : vector<6x28xf32> to vector<6x1xf32>
    %278 = vector.broadcast %277 : vector<6x1xf32> to vector<6x224xf32>
    %279 = vector.broadcast %276 : vector<1x224xf32> to vector<6x224xf32>
    %280 = arith.mulf %278, %279 : vector<6x224xf32>
    %281 = arith.addf %274, %280 : vector<6x224xf32>
    %c1_113 = arith.constant 1 : index
    %c1_114 = arith.constant 1 : index
    %c16_115 = arith.constant 16 : index
    %282 = vector.load %arg0[%c1_113, %c1_114, %c16_115] : memref<2x3x290xf32, #tpu.memory_space<vmem>>, vector<1x1x224xf32>
    %283 = vector.shape_cast %282 : vector<1x1x224xf32> to vector<1x224xf32>
    %284 = vector.extract_strided_slice %0 {offsets = [0, 12], sizes = [6, 1], strides = [1, 1]} : vector<6x28xf32> to vector<6x1xf32>
    %285 = vector.broadcast %284 : vector<6x1xf32> to vector<6x224xf32>
    %286 = vector.broadcast %283 : vector<1x224xf32> to vector<6x224xf32>
    %287 = arith.mulf %285, %286 : vector<6x224xf32>
    %288 = arith.addf %281, %287 : vector<6x224xf32>
    %c1_116 = arith.constant 1 : index
    %c1_117 = arith.constant 1 : index
    %c17_118 = arith.constant 17 : index
    %289 = vector.load %arg0[%c1_116, %c1_117, %c17_118] : memref<2x3x290xf32, #tpu.memory_space<vmem>>, vector<1x1x224xf32>
    %290 = vector.shape_cast %289 : vector<1x1x224xf32> to vector<1x224xf32>
    %291 = vector.extract_strided_slice %0 {offsets = [0, 13], sizes = [6, 1], strides = [1, 1]} : vector<6x28xf32> to vector<6x1xf32>
    %292 = vector.broadcast %291 : vector<6x1xf32> to vector<6x224xf32>
    %293 = vector.broadcast %290 : vector<1x224xf32> to vector<6x224xf32>
    %294 = arith.mulf %292, %293 : vector<6x224xf32>
    %295 = arith.addf %288, %294 : vector<6x224xf32>
    %c1_119 = arith.constant 1 : index
    %c1_120 = arith.constant 1 : index
    %c18_121 = arith.constant 18 : index
    %296 = vector.load %arg0[%c1_119, %c1_120, %c18_121] : memref<2x3x290xf32, #tpu.memory_space<vmem>>, vector<1x1x224xf32>
    %297 = vector.shape_cast %296 : vector<1x1x224xf32> to vector<1x224xf32>
    %298 = vector.extract_strided_slice %0 {offsets = [0, 14], sizes = [6, 1], strides = [1, 1]} : vector<6x28xf32> to vector<6x1xf32>
    %299 = vector.broadcast %298 : vector<6x1xf32> to vector<6x224xf32>
    %300 = vector.broadcast %297 : vector<1x224xf32> to vector<6x224xf32>
    %301 = arith.mulf %299, %300 : vector<6x224xf32>
    %302 = arith.addf %295, %301 : vector<6x224xf32>
    %c1_122 = arith.constant 1 : index
    %c1_123 = arith.constant 1 : index
    %c32_124 = arith.constant 32 : index
    %303 = vector.load %arg0[%c1_122, %c1_123, %c32_124] : memref<2x3x290xf32, #tpu.memory_space<vmem>>, vector<1x1x224xf32>
    %304 = vector.shape_cast %303 : vector<1x1x224xf32> to vector<1x224xf32>
    %305 = vector.extract_strided_slice %0 {offsets = [0, 15], sizes = [6, 1], strides = [1, 1]} : vector<6x28xf32> to vector<6x1xf32>
    %306 = vector.broadcast %305 : vector<6x1xf32> to vector<6x224xf32>
    %307 = vector.broadcast %304 : vector<1x224xf32> to vector<6x224xf32>
    %308 = arith.mulf %306, %307 : vector<6x224xf32>
    %309 = arith.addf %302, %308 : vector<6x224xf32>
    %c1_125 = arith.constant 1 : index
    %c1_126 = arith.constant 1 : index
    %c33_127 = arith.constant 33 : index
    %310 = vector.load %arg0[%c1_125, %c1_126, %c33_127] : memref<2x3x290xf32, #tpu.memory_space<vmem>>, vector<1x1x224xf32>
    %311 = vector.shape_cast %310 : vector<1x1x224xf32> to vector<1x224xf32>
    %312 = vector.extract_strided_slice %0 {offsets = [0, 16], sizes = [6, 1], strides = [1, 1]} : vector<6x28xf32> to vector<6x1xf32>
    %313 = vector.broadcast %312 : vector<6x1xf32> to vector<6x224xf32>
    %314 = vector.broadcast %311 : vector<1x224xf32> to vector<6x224xf32>
    %315 = arith.mulf %313, %314 : vector<6x224xf32>
    %316 = arith.addf %309, %315 : vector<6x224xf32>
    %c1_128 = arith.constant 1 : index
    %c1_129 = arith.constant 1 : index
    %c34_130 = arith.constant 34 : index
    %317 = vector.load %arg0[%c1_128, %c1_129, %c34_130] : memref<2x3x290xf32, #tpu.memory_space<vmem>>, vector<1x1x224xf32>
    %318 = vector.shape_cast %317 : vector<1x1x224xf32> to vector<1x224xf32>
    %319 = vector.extract_strided_slice %0 {offsets = [0, 17], sizes = [6, 1], strides = [1, 1]} : vector<6x28xf32> to vector<6x1xf32>
    %320 = vector.broadcast %319 : vector<6x1xf32> to vector<6x224xf32>
    %321 = vector.broadcast %318 : vector<1x224xf32> to vector<6x224xf32>
    %322 = arith.mulf %320, %321 : vector<6x224xf32>
    %323 = arith.addf %316, %322 : vector<6x224xf32>
    %c1_131 = arith.constant 1 : index
    %c2_132 = arith.constant 2 : index
    %c0_133 = arith.constant 0 : index
    %324 = vector.load %arg0[%c1_131, %c2_132, %c0_133] : memref<2x3x290xf32, #tpu.memory_space<vmem>>, vector<1x1x224xf32>
    %325 = vector.shape_cast %324 : vector<1x1x224xf32> to vector<1x224xf32>
    %326 = vector.extract_strided_slice %0 {offsets = [0, 18], sizes = [6, 1], strides = [1, 1]} : vector<6x28xf32> to vector<6x1xf32>
    %327 = vector.broadcast %326 : vector<6x1xf32> to vector<6x224xf32>
    %328 = vector.broadcast %325 : vector<1x224xf32> to vector<6x224xf32>
    %329 = arith.mulf %327, %328 : vector<6x224xf32>
    %330 = arith.addf %323, %329 : vector<6x224xf32>
    %c1_134 = arith.constant 1 : index
    %c2_135 = arith.constant 2 : index
    %c1_136 = arith.constant 1 : index
    %331 = vector.load %arg0[%c1_134, %c2_135, %c1_136] : memref<2x3x290xf32, #tpu.memory_space<vmem>>, vector<1x1x224xf32>
    %332 = vector.shape_cast %331 : vector<1x1x224xf32> to vector<1x224xf32>
    %333 = vector.extract_strided_slice %0 {offsets = [0, 19], sizes = [6, 1], strides = [1, 1]} : vector<6x28xf32> to vector<6x1xf32>
    %334 = vector.broadcast %333 : vector<6x1xf32> to vector<6x224xf32>
    %335 = vector.broadcast %332 : vector<1x224xf32> to vector<6x224xf32>
    %336 = arith.mulf %334, %335 : vector<6x224xf32>
    %337 = arith.addf %330, %336 : vector<6x224xf32>
    %c1_137 = arith.constant 1 : index
    %c2_138 = arith.constant 2 : index
    %c2_139 = arith.constant 2 : index
    %338 = vector.load %arg0[%c1_137, %c2_138, %c2_139] : memref<2x3x290xf32, #tpu.memory_space<vmem>>, vector<1x1x224xf32>
    %339 = vector.shape_cast %338 : vector<1x1x224xf32> to vector<1x224xf32>
    %340 = vector.extract_strided_slice %0 {offsets = [0, 20], sizes = [6, 1], strides = [1, 1]} : vector<6x28xf32> to vector<6x1xf32>
    %341 = vector.broadcast %340 : vector<6x1xf32> to vector<6x224xf32>
    %342 = vector.broadcast %339 : vector<1x224xf32> to vector<6x224xf32>
    %343 = arith.mulf %341, %342 : vector<6x224xf32>
    %344 = arith.addf %337, %343 : vector<6x224xf32>
    %c1_140 = arith.constant 1 : index
    %c2_141 = arith.constant 2 : index
    %c16_142 = arith.constant 16 : index
    %345 = vector.load %arg0[%c1_140, %c2_141, %c16_142] : memref<2x3x290xf32, #tpu.memory_space<vmem>>, vector<1x1x224xf32>
    %346 = vector.shape_cast %345 : vector<1x1x224xf32> to vector<1x224xf32>
    %347 = vector.extract_strided_slice %0 {offsets = [0, 21], sizes = [6, 1], strides = [1, 1]} : vector<6x28xf32> to vector<6x1xf32>
    %348 = vector.broadcast %347 : vector<6x1xf32> to vector<6x224xf32>
    %349 = vector.broadcast %346 : vector<1x224xf32> to vector<6x224xf32>
    %350 = arith.mulf %348, %349 : vector<6x224xf32>
    %351 = arith.addf %344, %350 : vector<6x224xf32>
    %c1_143 = arith.constant 1 : index
    %c2_144 = arith.constant 2 : index
    %c17_145 = arith.constant 17 : index
    %352 = vector.load %arg0[%c1_143, %c2_144, %c17_145] : memref<2x3x290xf32, #tpu.memory_space<vmem>>, vector<1x1x224xf32>
    %353 = vector.shape_cast %352 : vector<1x1x224xf32> to vector<1x224xf32>
    %354 = vector.extract_strided_slice %0 {offsets = [0, 22], sizes = [6, 1], strides = [1, 1]} : vector<6x28xf32> to vector<6x1xf32>
    %355 = vector.broadcast %354 : vector<6x1xf32> to vector<6x224xf32>
    %356 = vector.broadcast %353 : vector<1x224xf32> to vector<6x224xf32>
    %357 = arith.mulf %355, %356 : vector<6x224xf32>
    %358 = arith.addf %351, %357 : vector<6x224xf32>
    %c1_146 = arith.constant 1 : index
    %c2_147 = arith.constant 2 : index
    %c18_148 = arith.constant 18 : index
    %359 = vector.load %arg0[%c1_146, %c2_147, %c18_148] : memref<2x3x290xf32, #tpu.memory_space<vmem>>, vector<1x1x224xf32>
    %360 = vector.shape_cast %359 : vector<1x1x224xf32> to vector<1x224xf32>
    %361 = vector.extract_strided_slice %0 {offsets = [0, 23], sizes = [6, 1], strides = [1, 1]} : vector<6x28xf32> to vector<6x1xf32>
    %362 = vector.broadcast %361 : vector<6x1xf32> to vector<6x224xf32>
    %363 = vector.broadcast %360 : vector<1x224xf32> to vector<6x224xf32>
    %364 = arith.mulf %362, %363 : vector<6x224xf32>
    %365 = arith.addf %358, %364 : vector<6x224xf32>
    %c1_149 = arith.constant 1 : index
    %c2_150 = arith.constant 2 : index
    %c32_151 = arith.constant 32 : index
    %366 = vector.load %arg0[%c1_149, %c2_150, %c32_151] : memref<2x3x290xf32, #tpu.memory_space<vmem>>, vector<1x1x224xf32>
    %367 = vector.shape_cast %366 : vector<1x1x224xf32> to vector<1x224xf32>
    %368 = vector.extract_strided_slice %0 {offsets = [0, 24], sizes = [6, 1], strides = [1, 1]} : vector<6x28xf32> to vector<6x1xf32>
    %369 = vector.broadcast %368 : vector<6x1xf32> to vector<6x224xf32>
    %370 = vector.broadcast %367 : vector<1x224xf32> to vector<6x224xf32>
    %371 = arith.mulf %369, %370 : vector<6x224xf32>
    %372 = arith.addf %365, %371 : vector<6x224xf32>
    %c1_152 = arith.constant 1 : index
    %c2_153 = arith.constant 2 : index
    %c33_154 = arith.constant 33 : index
    %373 = vector.load %arg0[%c1_152, %c2_153, %c33_154] : memref<2x3x290xf32, #tpu.memory_space<vmem>>, vector<1x1x224xf32>
    %374 = vector.shape_cast %373 : vector<1x1x224xf32> to vector<1x224xf32>
    %375 = vector.extract_strided_slice %0 {offsets = [0, 25], sizes = [6, 1], strides = [1, 1]} : vector<6x28xf32> to vector<6x1xf32>
    %376 = vector.broadcast %375 : vector<6x1xf32> to vector<6x224xf32>
    %377 = vector.broadcast %374 : vector<1x224xf32> to vector<6x224xf32>
    %378 = arith.mulf %376, %377 : vector<6x224xf32>
    %379 = arith.addf %372, %378 : vector<6x224xf32>
    %c1_155 = arith.constant 1 : index
    %c2_156 = arith.constant 2 : index
    %c34_157 = arith.constant 34 : index
    %380 = vector.load %arg0[%c1_155, %c2_156, %c34_157] : memref<2x3x290xf32, #tpu.memory_space<vmem>>, vector<1x1x224xf32>
    %381 = vector.shape_cast %380 : vector<1x1x224xf32> to vector<1x224xf32>
    %382 = vector.extract_strided_slice %0 {offsets = [0, 26], sizes = [6, 1], strides = [1, 1]} : vector<6x28xf32> to vector<6x1xf32>
    %383 = vector.broadcast %382 : vector<6x1xf32> to vector<6x224xf32>
    %384 = vector.broadcast %381 : vector<1x224xf32> to vector<6x224xf32>
    %385 = arith.mulf %383, %384 : vector<6x224xf32>
    %386 = arith.addf %379, %385 : vector<6x224xf32>
    %c1_158 = arith.constant 1 : index
    %c0_159 = arith.constant 0 : index
    %c0_160 = arith.constant 0 : index
    %387 = vector.load %arg2[%c1_158, %c0_159, %c0_160] : memref<2x6x224xf32, #tpu.memory_space<vmem>>, vector<1x6x224xf32>
    %388 = vector.shape_cast %387 : vector<1x6x224xf32> to vector<6x224xf32>
    %389 = vector.shape_cast %386 : vector<6x224xf32> to vector<1x6x224xf32>
    tpu.vector_store %arg2[%c1_158, %c0_159, %c0_160], %389 {strides = array<i32>} : memref<2x6x224xf32, #tpu.memory_space<vmem>>, vector<1x6x224xf32>,
    return
  }
}

</mosaic_0001>

<llo_original>
// kernel: tudui_forward.1
$region0: #{tudui_forward.1}
  #allocation0 [shape = 'u32[]', space=smem, size = 0x4, offset = 0x4, fixed_abs, tag = 'smem constant byte address 0x4 - core index']
  #allocation1 [shape = 'u32[144,128]{1,0:T(1,128)}', space=vmem, size = 0x12000, scoped, tag = 'internal scratch']
  %s0 = inlined_call_operand.vmem [shape: f32[2,3,290], index: 0, kind: input, shape index: {}]
  %s1 = inlined_call_operand.vmem [shape: f32[6,28], index: 1, kind: input, shape index: {}]
  %s2 = inlined_call_operand.vmem [shape: f32[2,6,224], index: 2, kind: output, shape index: {}]
  %s3 = sld [smem:[#allocation0]]
  $region18: #{tudui_forward.1} parent=0
    _
  %s5 = ssub.s32 1, %s3
  %s6 = scalar_select 0, %s5, %s3
  // Predicated region
  $region2: #{tudui_forward.1} parent=0 // pred_check
    _
  $region3: #{tudui_forward.1} parent=0 // pred_check_branch
    %8 = sbr.rel (0) target = $region5
  $region4: #{tudui_forward.1} parent=0 // pred_region
    _
  $region5: #{tudui_forward.1} parent=0 // pred_fallthru
    _
  // Predicated region
  $region6: #{tudui_forward.1} parent=0 // pred_check
    _
  $region7: #{tudui_forward.1} parent=0 // pred_check_branch
    %10 = sbr.rel (0) target = $region9
  $region8: #{tudui_forward.1} parent=0 // pred_region
    _
  $region9: #{tudui_forward.1} parent=0 // pred_fallthru
    _
  %v11 = vld [vmem:[%s1] sm:$0x3f]
  %13 = vset.pattern.permute.xlu0 27
  %14 = vperm.xlu0 %13, %v11
  %v15 = vpop.permute.xlu0 %14
  %v17 = vld [vmem:[%s0] ss:$4 sm:$0x3]
  %18 = vset.pattern.permute.xlu0 0
  %19 = vperm.xlu0 %18, %v11
  %v20 = vpop.permute.xlu0 %19
  %v23 = vlaneseq
  %v24 = vshrl.u32 %v23, 7
  %v25 = vsub.s32 0, %v24
  %v26 = vrot.slane %v17, %v25
  %v27 = vlaneseq
  %v28 = vshrl.u32 %v27, 7
  %v29 = vsub.s32 1, %v28
  %v30 = vrot.slane %v17, %v29
  %v33 = vmul.f32 %v20, %v26
  %v34 = vmul.f32 %v20, %v30
  %v35 = vadd.f32 %v15, %v33
  %v36 = vadd.f32 %v15, %v34
  %37 = vset.pattern.permute.xlu0 1
  %38 = vperm.xlu0 %37, %v11
  %v39 = vpop.permute.xlu0 %38
  %v41 = vmul.f32 %v39, %v26
  %v42 = vmul.f32 %v39, %v30
  %45 = vrot.lane.b32.xlu0 %v41, 127
  %v46 = vpop.permute.xlu0 %45
  %47 = vrot.lane.b32.xlu0 %v42, 127
  %v48 = vpop.permute.xlu0 %47
  %vm49 = vcmask 1039360
  %v50 = vsel %vm49, %v46, %v48
  %v53 = vadd.f32 %v35, %v50
  %v54 = vadd.f32 %v36, %v48
  %55 = vset.pattern.permute.xlu0 2
  %56 = vperm.xlu0 %55, %v11
  %v57 = vpop.permute.xlu0 %56
  %v59 = vmul.f32 %v57, %v26
  %v60 = vmul.f32 %v57, %v30
  %63 = vrot.lane.b32.xlu0 %v59, 126
  %v64 = vpop.permute.xlu0 %63
  %65 = vrot.lane.b32.xlu0 %v60, 126
  %v66 = vpop.permute.xlu0 %65
  %vm67 = vcmask 1031168
  %v68 = vsel %vm67, %v64, %v66
  %v71 = vadd.f32 %v53, %v68
  %v72 = vadd.f32 %v54, %v66
  %73 = vset.pattern.permute.xlu0 3
  %74 = vperm.xlu0 %73, %v11
  %v75 = vpop.permute.xlu0 %74
  %v77 = vmul.f32 %v75, %v26
  %v78 = vmul.f32 %v75, %v30
  %81 = vrot.lane.b32.xlu0 %v77, 112
  %v82 = vpop.permute.xlu0 %81
  %83 = vrot.lane.b32.xlu0 %v78, 112
  %v84 = vpop.permute.xlu0 %83
  %vm85 = vcmask 916480
  %v86 = vsel %vm85, %v82, %v84
  %v89 = vadd.f32 %v71, %v86
  %v90 = vadd.f32 %v72, %v84
  %91 = vset.pattern.permute.xlu0 4
  %92 = vperm.xlu0 %91, %v11
  %v93 = vpop.permute.xlu0 %92
  %v95 = vmul.f32 %v93, %v26
  %v96 = vmul.f32 %v93, %v30
  %99 = vrot.lane.b32.xlu0 %v95, 111
  %v100 = vpop.permute.xlu0 %99
  %101 = vrot.lane.b32.xlu0 %v96, 111
  %v102 = vpop.permute.xlu0 %101
  %vm103 = vcmask 908288
  %v104 = vsel %vm103, %v100, %v102
  %v107 = vadd.f32 %v89, %v104
  %v108 = vadd.f32 %v90, %v102
  %109 = vset.pattern.permute.xlu0 5
  %110 = vperm.xlu0 %109, %v11
  %v111 = vpop.permute.xlu0 %110
  %v113 = vmul.f32 %v111, %v26
  %v114 = vmul.f32 %v111, %v30
  %117 = vrot.lane.b32.xlu0 %v113, 110
  %v118 = vpop.permute.xlu0 %117
  %119 = vrot.lane.b32.xlu0 %v114, 110
  %v120 = vpop.permute.xlu0 %119
  %vm121 = vcmask 900096
  %v122 = vsel %vm121, %v118, %v120
  %v125 = vadd.f32 %v107, %v122
  %v126 = vadd.f32 %v108, %v120
  %127 = vset.pattern.permute.xlu0 6
  %128 = vperm.xlu0 %127, %v11
  %v129 = vpop.permute.xlu0 %128
  %v131 = vmul.f32 %v129, %v26
  %v132 = vmul.f32 %v129, %v30
  %135 = vrot.lane.b32.xlu0 %v131, 96
  %v136 = vpop.permute.xlu0 %135
  %137 = vrot.lane.b32.xlu0 %v132, 96
  %v138 = vpop.permute.xlu0 %137
  %vm139 = vcmask 785408
  %v140 = vsel %vm139, %v136, %v138
  %v143 = vadd.f32 %v125, %v140
  %v144 = vadd.f32 %v126, %v138
  %v145 = vld [vmem:[%s0] ss:$4 sm:$0x7]
  %146 = vset.pattern.permute.xlu0 7
  %147 = vperm.xlu0 %146, %v11
  %v148 = vpop.permute.xlu0 %147
  %v151 = vlaneseq
  %v152 = vshrl.u32 %v151, 7
  %v153 = vsub.s32 0, %v152
  %v154 = vrot.slane %v145, %v153
  %v155 = vlaneseq
  %v156 = vshrl.u32 %v155, 7
  %v157 = vsub.s32 1, %v156
  %v158 = vrot.slane %v145, %v157
  %v159 = vlaneseq
  %v160 = vshrl.u32 %v159, 7
  %v161 = vsub.s32 2, %v160
  %v162 = vrot.slane %v145, %v161
  %v166 = vmul.f32 %v148, %v154
  %v167 = vmul.f32 %v148, %v158
  %v168 = vmul.f32 %v148, %v162
  %172 = vrot.lane.b32.xlu0 %v166, 95
  %v173 = vpop.permute.xlu0 %172
  %174 = vrot.lane.b32.xlu0 %v167, 95
  %v175 = vpop.permute.xlu0 %174
  %176 = vrot.lane.b32.xlu0 %v168, 95
  %v177 = vpop.permute.xlu0 %176
  %vm178 = vcmask 777216
  %v179 = vsel %vm178, %v173, %v175
  %v180 = vsel %vm178, %v175, %v177
  %v183 = vadd.f32 %v143, %v179
  %v184 = vadd.f32 %v144, %v180
  %185 = vset.pattern.permute.xlu0 8
  %186 = vperm.xlu0 %185, %v11
  %v187 = vpop.permute.xlu0 %186
  %v189 = vmul.f32 %v187, %v154
  %v190 = vmul.f32 %v187, %v158
  %v191 = vmul.f32 %v187, %v162
  %195 = vrot.lane.b32.xlu0 %v189, 94
  %v196 = vpop.permute.xlu0 %195
  %197 = vrot.lane.b32.xlu0 %v190, 94
  %v198 = vpop.permute.xlu0 %197
  %199 = vrot.lane.b32.xlu0 %v191, 94
  %v200 = vpop.permute.xlu0 %199
  %vm201 = vcmask 769024
  %v202 = vsel %vm201, %v196, %v198
  %v203 = vsel %vm201, %v198, %v200
  %v206 = vadd.f32 %v183, %v202
  %v207 = vadd.f32 %v184, %v203
  %s208 = scalar_lea.vmem %s0, 1
  %v209 = vld [vmem:[%s208] ss:$4 sm:$0x3]
  %210 = vset.pattern.permute.xlu0 9
  %211 = vperm.xlu0 %210, %v11
  %v212 = vpop.permute.xlu0 %211
  %v215 = vlaneseq
  %v216 = vshrl.u32 %v215, 7
  %v217 = vsub.s32 0, %v216
  %v218 = vrot.slane %v209, %v217
  %v219 = vlaneseq
  %v220 = vshrl.u32 %v219, 7
  %v221 = vsub.s32 1, %v220
  %v222 = vrot.slane %v209, %v221
  %v225 = vmul.f32 %v212, %v218
  %v226 = vmul.f32 %v212, %v222
  %v227 = vadd.f32 %v206, %v225
  %v228 = vadd.f32 %v207, %v226
  %229 = vset.pattern.permute.xlu0 10
  %230 = vperm.xlu0 %229, %v11
  %v231 = vpop.permute.xlu0 %230
  %v233 = vmul.f32 %v231, %v218
  %v234 = vmul.f32 %v231, %v222
  %237 = vrot.lane.b32.xlu0 %v233, 127
  %v238 = vpop.permute.xlu0 %237
  %239 = vrot.lane.b32.xlu0 %v234, 127
  %v240 = vpop.permute.xlu0 %239
  %v241 = vsel %vm49, %v238, %v240
  %v244 = vadd.f32 %v227, %v241
  %v245 = vadd.f32 %v228, %v240
  %246 = vset.pattern.permute.xlu0 11
  %247 = vperm.xlu0 %246, %v11
  %v248 = vpop.permute.xlu0 %247
  %v250 = vmul.f32 %v248, %v218
  %v251 = vmul.f32 %v248, %v222
  %254 = vrot.lane.b32.xlu0 %v250, 126
  %v255 = vpop.permute.xlu0 %254
  %256 = vrot.lane.b32.xlu0 %v251, 126
  %v257 = vpop.permute.xlu0 %256
  %v258 = vsel %vm67, %v255, %v257
  %v261 = vadd.f32 %v244, %v258
  %v262 = vadd.f32 %v245, %v257
  %263 = vset.pattern.permute.xlu0 12
  %264 = vperm.xlu0 %263, %v11
  %v265 = vpop.permute.xlu0 %264
  %v267 = vmul.f32 %v265, %v218
  %v268 = vmul.f32 %v265, %v222
  %271 = vrot.lane.b32.xlu0 %v267, 112
  %v272 = vpop.permute.xlu0 %271
  %273 = vrot.lane.b32.xlu0 %v268, 112
  %v274 = vpop.permute.xlu0 %273
  %v275 = vsel %vm85, %v272, %v274
  %v278 = vadd.f32 %v261, %v275
  %v279 = vadd.f32 %v262, %v274
  %280 = vset.pattern.permute.xlu0 13
  %281 = vperm.xlu0 %280, %v11
  %v282 = vpop.permute.xlu0 %281
  %v284 = vmul.f32 %v282, %v218
  %v285 = vmul.f32 %v282, %v222
  %288 = vrot.lane.b32.xlu0 %v284, 111
  %v289 = vpop.permute.xlu0 %288
  %290 = vrot.lane.b32.xlu0 %v285, 111
  %v291 = vpop.permute.xlu0 %290
  %v292 = vsel %vm103, %v289, %v291
  %v295 = vadd.f32 %v278, %v292
  %v296 = vadd.f32 %v279, %v291
  %297 = vset.pattern.permute.xlu0 14
  %298 = vperm.xlu0 %297, %v11
  %v299 = vpop.permute.xlu0 %298
  %v301 = vmul.f32 %v299, %v218
  %v302 = vmul.f32 %v299, %v222
  %305 = vrot.lane.b32.xlu0 %v301, 110
  %v306 = vpop.permute.xlu0 %305
  %307 = vrot.lane.b32.xlu0 %v302, 110
  %v308 = vpop.permute.xlu0 %307
  %v309 = vsel %vm121, %v306, %v308
  %v312 = vadd.f32 %v295, %v309
  %v313 = vadd.f32 %v296, %v308
  %314 = vset.pattern.permute.xlu0 15
  %315 = vperm.xlu0 %314, %v11
  %v316 = vpop.permute.xlu0 %315
  %v318 = vmul.f32 %v316, %v218
  %v319 = vmul.f32 %v316, %v222
  %322 = vrot.lane.b32.xlu0 %v318, 96
  %v323 = vpop.permute.xlu0 %322
  %324 = vrot.lane.b32.xlu0 %v319, 96
  %v325 = vpop.permute.xlu0 %324
  %v326 = vsel %vm139, %v323, %v325
  %v329 = vadd.f32 %v312, %v326
  %v330 = vadd.f32 %v313, %v325
  %v331 = vld [vmem:[%s208] ss:$4 sm:$0x7]
  %332 = vset.pattern.permute.xlu0 16
  %333 = vperm.xlu0 %332, %v11
  %v334 = vpop.permute.xlu0 %333
  %v337 = vlaneseq
  %v338 = vshrl.u32 %v337, 7
  %v339 = vsub.s32 0, %v338
  %v340 = vrot.slane %v331, %v339
  %v341 = vlaneseq
  %v342 = vshrl.u32 %v341, 7
  %v343 = vsub.s32 1, %v342
  %v344 = vrot.slane %v331, %v343
  %v345 = vlaneseq
  %v346 = vshrl.u32 %v345, 7
  %v347 = vsub.s32 2, %v346
  %v348 = vrot.slane %v331, %v347
  %v352 = vmul.f32 %v334, %v340
  %v353 = vmul.f32 %v334, %v344
  %v354 = vmul.f32 %v334, %v348
  %358 = vrot.lane.b32.xlu0 %v352, 95
  %v359 = vpop.permute.xlu0 %358
  %360 = vrot.lane.b32.xlu0 %v353, 95
  %v361 = vpop.permute.xlu0 %360
  %362 = vrot.lane.b32.xlu0 %v354, 95
  %v363 = vpop.permute.xlu0 %362
  %v364 = vsel %vm178, %v359, %v361
  %v365 = vsel %vm178, %v361, %v363
  %v368 = vadd.f32 %v329, %v364
  %v369 = vadd.f32 %v330, %v365
  %370 = vset.pattern.permute.xlu0 17
  %371 = vperm.xlu0 %370, %v11
  %v372 = vpop.permute.xlu0 %371
  %v374 = vmul.f32 %v372, %v340
  %v375 = vmul.f32 %v372, %v344
  %v376 = vmul.f32 %v372, %v348
  %380 = vrot.lane.b32.xlu0 %v374, 94
  %v381 = vpop.permute.xlu0 %380
  %382 = vrot.lane.b32.xlu0 %v375, 94
  %v383 = vpop.permute.xlu0 %382
  %384 = vrot.lane.b32.xlu0 %v376, 94
  %v385 = vpop.permute.xlu0 %384
  %v386 = vsel %vm201, %v381, %v383
  %v387 = vsel %vm201, %v383, %v385
  %v390 = vadd.f32 %v368, %v386
  %v391 = vadd.f32 %v369, %v387
  %s392 = scalar_lea.vmem %s0, 2
  %v393 = vld [vmem:[%s392] ss:$4 sm:$0x3]
  %394 = vset.pattern.permute.xlu0 18
  %395 = vperm.xlu0 %394, %v11
  %v396 = vpop.permute.xlu0 %395
  %v399 = vlaneseq
  %v400 = vshrl.u32 %v399, 7
  %v401 = vsub.s32 0, %v400
  %v402 = vrot.slane %v393, %v401
  %v403 = vlaneseq
  %v404 = vshrl.u32 %v403, 7
  %v405 = vsub.s32 1, %v404
  %v406 = vrot.slane %v393, %v405
  %v409 = vmul.f32 %v396, %v402
  %v410 = vmul.f32 %v396, %v406
  %v411 = vadd.f32 %v390, %v409
  %v412 = vadd.f32 %v391, %v410
  %413 = vset.pattern.permute.xlu0 19
  %414 = vperm.xlu0 %413, %v11
  %v415 = vpop.permute.xlu0 %414
  %v417 = vmul.f32 %v415, %v402
  %v418 = vmul.f32 %v415, %v406
  %421 = vrot.lane.b32.xlu0 %v417, 127
  %v422 = vpop.permute.xlu0 %421
  %423 = vrot.lane.b32.xlu0 %v418, 127
  %v424 = vpop.permute.xlu0 %423
  %v425 = vsel %vm49, %v422, %v424
  %v428 = vadd.f32 %v411, %v425
  %v429 = vadd.f32 %v412, %v424
  %430 = vset.pattern.permute.xlu0 20
  %431 = vperm.xlu0 %430, %v11
  %v432 = vpop.permute.xlu0 %431
  %v434 = vmul.f32 %v432, %v402
  %v435 = vmul.f32 %v432, %v406
  %438 = vrot.lane.b32.xlu0 %v434, 126
  %v439 = vpop.permute.xlu0 %438
  %440 = vrot.lane.b32.xlu0 %v435, 126
  %v441 = vpop.permute.xlu0 %440
  %v442 = vsel %vm67, %v439, %v441
  %v445 = vadd.f32 %v428, %v442
  %v446 = vadd.f32 %v429, %v441
  %447 = vset.pattern.permute.xlu0 21
  %448 = vperm.xlu0 %447, %v11
  %v449 = vpop.permute.xlu0 %448
  %v451 = vmul.f32 %v449, %v402
  %v452 = vmul.f32 %v449, %v406
  %455 = vrot.lane.b32.xlu0 %v451, 112
  %v456 = vpop.permute.xlu0 %455
  %457 = vrot.lane.b32.xlu0 %v452, 112
  %v458 = vpop.permute.xlu0 %457
  %v459 = vsel %vm85, %v456, %v458
  %v462 = vadd.f32 %v445, %v459
  %v463 = vadd.f32 %v446, %v458
  %464 = vset.pattern.permute.xlu0 22
  %465 = vperm.xlu0 %464, %v11
  %v466 = vpop.permute.xlu0 %465
  %v468 = vmul.f32 %v466, %v402
  %v469 = vmul.f32 %v466, %v406
  %472 = vrot.lane.b32.xlu0 %v468, 111
  %v473 = vpop.permute.xlu0 %472
  %474 = vrot.lane.b32.xlu0 %v469, 111
  %v475 = vpop.permute.xlu0 %474
  %v476 = vsel %vm103, %v473, %v475
  %v479 = vadd.f32 %v462, %v476
  %v480 = vadd.f32 %v463, %v475
  %481 = vset.pattern.permute.xlu0 23
  %482 = vperm.xlu0 %481, %v11
  %v483 = vpop.permute.xlu0 %482
  %v485 = vmul.f32 %v483, %v402
  %v486 = vmul.f32 %v483, %v406
  %489 = vrot.lane.b32.xlu0 %v485, 110
  %v490 = vpop.permute.xlu0 %489
  %491 = vrot.lane.b32.xlu0 %v486, 110
  %v492 = vpop.permute.xlu0 %491
  %v493 = vsel %vm121, %v490, %v492
  %v496 = vadd.f32 %v479, %v493
  %v497 = vadd.f32 %v480, %v492
  %498 = vset.pattern.permute.xlu0 24
  %499 = vperm.xlu0 %498, %v11
  %v500 = vpop.permute.xlu0 %499
  %v502 = vmul.f32 %v500, %v402
  %v503 = vmul.f32 %v500, %v406
  %506 = vrot.lane.b32.xlu0 %v502, 96
  %v507 = vpop.permute.xlu0 %506
  %508 = vrot.lane.b32.xlu0 %v503, 96
  %v509 = vpop.permute.xlu0 %508
  %v510 = vsel %vm139, %v507, %v509
  %v513 = vadd.f32 %v496, %v510
  %v514 = vadd.f32 %v497, %v509
  %v515 = vld [vmem:[%s392] ss:$4 sm:$0x7]
  %516 = vset.pattern.permute.xlu0 25
  %517 = vperm.xlu0 %516, %v11
  %v518 = vpop.permute.xlu0 %517
  %v521 = vlaneseq
  %v522 = vshrl.u32 %v521, 7
  %v523 = vsub.s32 0, %v522
  %v524 = vrot.slane %v515, %v523
  %v525 = vlaneseq
  %v526 = vshrl.u32 %v525, 7
  %v527 = vsub.s32 1, %v526
  %v528 = vrot.slane %v515, %v527
  %v529 = vlaneseq
  %v530 = vshrl.u32 %v529, 7
  %v531 = vsub.s32 2, %v530
  %v532 = vrot.slane %v515, %v531
  %v536 = vmul.f32 %v518, %v524
  %v537 = vmul.f32 %v518, %v528
  %v538 = vmul.f32 %v518, %v532
  %542 = vrot.lane.b32.xlu0 %v536, 95
  %v543 = vpop.permute.xlu0 %542
  %544 = vrot.lane.b32.xlu0 %v537, 95
  %v545 = vpop.permute.xlu0 %544
  %546 = vrot.lane.b32.xlu0 %v538, 95
  %v547 = vpop.permute.xlu0 %546
  %v548 = vsel %vm178, %v543, %v545
  %v549 = vsel %vm178, %v545, %v547
  %v552 = vadd.f32 %v513, %v548
  %v553 = vadd.f32 %v514, %v549
  %554 = vset.pattern.permute.xlu0 26
  %555 = vperm.xlu0 %554, %v11
  %v556 = vpop.permute.xlu0 %555
  %v558 = vmul.f32 %v556, %v524
  %v559 = vmul.f32 %v556, %v528
  %v560 = vmul.f32 %v556, %v532
  %564 = vrot.lane.b32.xlu0 %v558, 94
  %v565 = vpop.permute.xlu0 %564
  %566 = vrot.lane.b32.xlu0 %v559, 94
  %v567 = vpop.permute.xlu0 %566
  %568 = vrot.lane.b32.xlu0 %v560, 94
  %v569 = vpop.permute.xlu0 %568
  %v570 = vsel %vm201, %v565, %v567
  %v571 = vsel %vm201, %v567, %v569
  %v574 = vadd.f32 %v552, %v570
  %v575 = vadd.f32 %v553, %v571
  %576 = vst [vmem:[%s2] sm:$0x3f] %v574
  %vm577 = vcmask 783360
  %578 = vst.msk [vmem:[%s2 + $0x8] sm:$0x3f] %vm577, %v575
  %s579 = scalar_lea.vmem %s0, 12
  %v580 = vld [vmem:[%s579] ss:$4 sm:$0x3]
  %v582 = vlaneseq
  %v583 = vshrl.u32 %v582, 7
  %v584 = vsub.s32 0, %v583
  %v585 = vrot.slane %v580, %v584
  %v586 = vlaneseq
  %v587 = vshrl.u32 %v586, 7
  %v588 = vsub.s32 1, %v587
  %v589 = vrot.slane %v580, %v588
  %v592 = vmul.f32 %v20, %v585
  %v593 = vmul.f32 %v20, %v589
  %v594 = vadd.f32 %v15, %v592
  %v595 = vadd.f32 %v15, %v593
  %v596 = vmul.f32 %v39, %v585
  %v597 = vmul.f32 %v39, %v589
  %600 = vrot.lane.b32.xlu0 %v596, 127
  %v601 = vpop.permute.xlu0 %600
  %602 = vrot.lane.b32.xlu0 %v597, 127
  %v603 = vpop.permute.xlu0 %602
  %v604 = vsel %vm49, %v601, %v603
  %v607 = vadd.f32 %v594, %v604
  %v608 = vadd.f32 %v595, %v603
  %v609 = vmul.f32 %v57, %v585
  %v610 = vmul.f32 %v57, %v589
  %613 = vrot.lane.b32.xlu0 %v609, 126
  %v614 = vpop.permute.xlu0 %613
  %615 = vrot.lane.b32.xlu0 %v610, 126
  %v616 = vpop.permute.xlu0 %615
  %v617 = vsel %vm67, %v614, %v616
  %v620 = vadd.f32 %v607, %v617
  %v621 = vadd.f32 %v608, %v616
  %v622 = vmul.f32 %v75, %v585
  %v623 = vmul.f32 %v75, %v589
  %626 = vrot.lane.b32.xlu0 %v622, 112
  %v627 = vpop.permute.xlu0 %626
  %628 = vrot.lane.b32.xlu0 %v623, 112
  %v629 = vpop.permute.xlu0 %628
  %v630 = vsel %vm85, %v627, %v629
  %v633 = vadd.f32 %v620, %v630
  %v634 = vadd.f32 %v621, %v629
  %v635 = vmul.f32 %v93, %v585
  %v636 = vmul.f32 %v93, %v589
  %639 = vrot.lane.b32.xlu0 %v635, 111
  %v640 = vpop.permute.xlu0 %639
  %641 = vrot.lane.b32.xlu0 %v636, 111
  %v642 = vpop.permute.xlu0 %641
  %v643 = vsel %vm103, %v640, %v642
  %v646 = vadd.f32 %v633, %v643
  %v647 = vadd.f32 %v634, %v642
  %v648 = vmul.f32 %v111, %v585
  %v649 = vmul.f32 %v111, %v589
  %652 = vrot.lane.b32.xlu0 %v648, 110
  %v653 = vpop.permute.xlu0 %652
  %654 = vrot.lane.b32.xlu0 %v649, 110
  %v655 = vpop.permute.xlu0 %654
  %v656 = vsel %vm121, %v653, %v655
  %v659 = vadd.f32 %v646, %v656
  %v660 = vadd.f32 %v647, %v655
  %v661 = vmul.f32 %v129, %v585
  %v662 = vmul.f32 %v129, %v589
  %665 = vrot.lane.b32.xlu0 %v661, 96
  %v666 = vpop.permute.xlu0 %665
  %667 = vrot.lane.b32.xlu0 %v662, 96
  %v668 = vpop.permute.xlu0 %667
  %v669 = vsel %vm139, %v666, %v668
  %v672 = vadd.f32 %v659, %v669
  %v673 = vadd.f32 %v660, %v668
  %v674 = vld [vmem:[%s579] ss:$4 sm:$0x7]
  %v676 = vlaneseq
  %v677 = vshrl.u32 %v676, 7
  %v678 = vsub.s32 0, %v677
  %v679 = vrot.slane %v674, %v678
  %v680 = vlaneseq
  %v681 = vshrl.u32 %v680, 7
  %v682 = vsub.s32 1, %v681
  %v683 = vrot.slane %v674, %v682
  %v684 = vlaneseq
  %v685 = vshrl.u32 %v684, 7
  %v686 = vsub.s32 2, %v685
  %v687 = vrot.slane %v674, %v686
  %v691 = vmul.f32 %v148, %v679
  %v692 = vmul.f32 %v148, %v683
  %v693 = vmul.f32 %v148, %v687
  %697 = vrot.lane.b32.xlu0 %v691, 95
  %v698 = vpop.permute.xlu0 %697
  %699 = vrot.lane.b32.xlu0 %v692, 95
  %v700 = vpop.permute.xlu0 %699
  %701 = vrot.lane.b32.xlu0 %v693, 95
  %v702 = vpop.permute.xlu0 %701
  %v703 = vsel %vm178, %v698, %v700
  %v704 = vsel %vm178, %v700, %v702
  %v707 = vadd.f32 %v672, %v703
  %v708 = vadd.f32 %v673, %v704
  %v709 = vmul.f32 %v187, %v679
  %v710 = vmul.f32 %v187, %v683
  %v711 = vmul.f32 %v187, %v687
  %715 = vrot.lane.b32.xlu0 %v709, 94
  %v716 = vpop.permute.xlu0 %715
  %717 = vrot.lane.b32.xlu0 %v710, 94
  %v718 = vpop.permute.xlu0 %717
  %719 = vrot.lane.b32.xlu0 %v711, 94
  %v720 = vpop.permute.xlu0 %719
  %v721 = vsel %vm201, %v716, %v718
  %v722 = vsel %vm201, %v718, %v720
  %v725 = vadd.f32 %v707, %v721
  %v726 = vadd.f32 %v708, %v722
  %s727 = scalar_lea.vmem %s579, 1
  %v728 = vld [vmem:[%s727] ss:$4 sm:$0x3]
  %v730 = vlaneseq
  %v731 = vshrl.u32 %v730, 7
  %v732 = vsub.s32 0, %v731
  %v733 = vrot.slane %v728, %v732
  %v734 = vlaneseq
  %v735 = vshrl.u32 %v734, 7
  %v736 = vsub.s32 1, %v735
  %v737 = vrot.slane %v728, %v736
  %v740 = vmul.f32 %v212, %v733
  %v741 = vmul.f32 %v212, %v737
  %v742 = vadd.f32 %v725, %v740
  %v743 = vadd.f32 %v726, %v741
  %v744 = vmul.f32 %v231, %v733
  %v745 = vmul.f32 %v231, %v737
  %748 = vrot.lane.b32.xlu0 %v744, 127
  %v749 = vpop.permute.xlu0 %748
  %750 = vrot.lane.b32.xlu0 %v745, 127
  %v751 = vpop.permute.xlu0 %750
  %v752 = vsel %vm49, %v749, %v751
  %v755 = vadd.f32 %v742, %v752
  %v756 = vadd.f32 %v743, %v751
  %v757 = vmul.f32 %v248, %v733
  %v758 = vmul.f32 %v248, %v737
  %761 = vrot.lane.b32.xlu0 %v757, 126
  %v762 = vpop.permute.xlu0 %761
  %763 = vrot.lane.b32.xlu0 %v758, 126
  %v764 = vpop.permute.xlu0 %763
  %v765 = vsel %vm67, %v762, %v764
  %v768 = vadd.f32 %v755, %v765
  %v769 = vadd.f32 %v756, %v764
  %v770 = vmul.f32 %v265, %v733
  %v771 = vmul.f32 %v265, %v737
  %774 = vrot.lane.b32.xlu0 %v770, 112
  %v775 = vpop.permute.xlu0 %774
  %776 = vrot.lane.b32.xlu0 %v771, 112
  %v777 = vpop.permute.xlu0 %776
  %v778 = vsel %vm85, %v775, %v777
  %v781 = vadd.f32 %v768, %v778
  %v782 = vadd.f32 %v769, %v777
  %v783 = vmul.f32 %v282, %v733
  %v784 = vmul.f32 %v282, %v737
  %787 = vrot.lane.b32.xlu0 %v783, 111
  %v788 = vpop.permute.xlu0 %787
  %789 = vrot.lane.b32.xlu0 %v784, 111
  %v790 = vpop.permute.xlu0 %789
  %v791 = vsel %vm103, %v788, %v790
  %v794 = vadd.f32 %v781, %v791
  %v795 = vadd.f32 %v782, %v790
  %v796 = vmul.f32 %v299, %v733
  %v797 = vmul.f32 %v299, %v737
  %800 = vrot.lane.b32.xlu0 %v796, 110
  %v801 = vpop.permute.xlu0 %800
  %802 = vrot.lane.b32.xlu0 %v797, 110
  %v803 = vpop.permute.xlu0 %802
  %v804 = vsel %vm121, %v801, %v803
  %v807 = vadd.f32 %v794, %v804
  %v808 = vadd.f32 %v795, %v803
  %v809 = vmul.f32 %v316, %v733
  %v810 = vmul.f32 %v316, %v737
  %813 = vrot.lane.b32.xlu0 %v809, 96
  %v814 = vpop.permute.xlu0 %813
  %815 = vrot.lane.b32.xlu0 %v810, 96
  %v816 = vpop.permute.xlu0 %815
  %v817 = vsel %vm139, %v814, %v816
  %v820 = vadd.f32 %v807, %v817
  %v821 = vadd.f32 %v808, %v816
  %v822 = vld [vmem:[%s727] ss:$4 sm:$0x7]
  %v824 = vlaneseq
  %v825 = vshrl.u32 %v824, 7
  %v826 = vsub.s32 0, %v825
  %v827 = vrot.slane %v822, %v826
  %v828 = vlaneseq
  %v829 = vshrl.u32 %v828, 7
  %v830 = vsub.s32 1, %v829
  %v831 = vrot.slane %v822, %v830
  %v832 = vlaneseq
  %v833 = vshrl.u32 %v832, 7
  %v834 = vsub.s32 2, %v833
  %v835 = vrot.slane %v822, %v834
  %v839 = vmul.f32 %v334, %v827
  %v840 = vmul.f32 %v334, %v831
  %v841 = vmul.f32 %v334, %v835
  %845 = vrot.lane.b32.xlu0 %v839, 95
  %v846 = vpop.permute.xlu0 %845
  %847 = vrot.lane.b32.xlu0 %v840, 95
  %v848 = vpop.permute.xlu0 %847
  %849 = vrot.lane.b32.xlu0 %v841, 95
  %v850 = vpop.permute.xlu0 %849
  %v851 = vsel %vm178, %v846, %v848
  %v852 = vsel %vm178, %v848, %v850
  %v855 = vadd.f32 %v820, %v851
  %v856 = vadd.f32 %v821, %v852
  %v857 = vmul.f32 %v372, %v827
  %v858 = vmul.f32 %v372, %v831
  %v859 = vmul.f32 %v372, %v835
  %863 = vrot.lane.b32.xlu0 %v857, 94
  %v864 = vpop.permute.xlu0 %863
  %865 = vrot.lane.b32.xlu0 %v858, 94
  %v866 = vpop.permute.xlu0 %865
  %867 = vrot.lane.b32.xlu0 %v859, 94
  %v868 = vpop.permute.xlu0 %867
  %v869 = vsel %vm201, %v864, %v866
  %v870 = vsel %vm201, %v866, %v868
  %v873 = vadd.f32 %v855, %v869
  %v874 = vadd.f32 %v856, %v870
  %s875 = scalar_lea.vmem %s579, 2
  %v876 = vld [vmem:[%s875] ss:$4 sm:$0x3]
  %v878 = vlaneseq
  %v879 = vshrl.u32 %v878, 7
  %v880 = vsub.s32 0, %v879
  %v881 = vrot.slane %v876, %v880
  %v882 = vlaneseq
  %v883 = vshrl.u32 %v882, 7
  %v884 = vsub.s32 1, %v883
  %v885 = vrot.slane %v876, %v884
  %v888 = vmul.f32 %v396, %v881
  %v889 = vmul.f32 %v396, %v885
  %v890 = vadd.f32 %v873, %v888
  %v891 = vadd.f32 %v874, %v889
  %v892 = vmul.f32 %v415, %v881
  %v893 = vmul.f32 %v415, %v885
  %896 = vrot.lane.b32.xlu0 %v892, 127
  %v897 = vpop.permute.xlu0 %896
  %898 = vrot.lane.b32.xlu0 %v893, 127
  %v899 = vpop.permute.xlu0 %898
  %v900 = vsel %vm49, %v897, %v899
  %v903 = vadd.f32 %v890, %v900
  %v904 = vadd.f32 %v891, %v899
  %v905 = vmul.f32 %v432, %v881
  %v906 = vmul.f32 %v432, %v885
  %909 = vrot.lane.b32.xlu0 %v905, 126
  %v910 = vpop.permute.xlu0 %909
  %911 = vrot.lane.b32.xlu0 %v906, 126
  %v912 = vpop.permute.xlu0 %911
  %v913 = vsel %vm67, %v910, %v912
  %v916 = vadd.f32 %v903, %v913
  %v917 = vadd.f32 %v904, %v912
  %v918 = vmul.f32 %v449, %v881
  %v919 = vmul.f32 %v449, %v885
  %922 = vrot.lane.b32.xlu0 %v918, 112
  %v923 = vpop.permute.xlu0 %922
  %924 = vrot.lane.b32.xlu0 %v919, 112
  %v925 = vpop.permute.xlu0 %924
  %v926 = vsel %vm85, %v923, %v925
  %v929 = vadd.f32 %v916, %v926
  %v930 = vadd.f32 %v917, %v925
  %v931 = vmul.f32 %v466, %v881
  %v932 = vmul.f32 %v466, %v885
  %935 = vrot.lane.b32.xlu0 %v931, 111
  %v936 = vpop.permute.xlu0 %935
  %937 = vrot.lane.b32.xlu0 %v932, 111
  %v938 = vpop.permute.xlu0 %937
  %v939 = vsel %vm103, %v936, %v938
  %v942 = vadd.f32 %v929, %v939
  %v943 = vadd.f32 %v930, %v938
  %v944 = vmul.f32 %v483, %v881
  %v945 = vmul.f32 %v483, %v885
  %948 = vrot.lane.b32.xlu0 %v944, 110
  %v949 = vpop.permute.xlu0 %948
  %950 = vrot.lane.b32.xlu0 %v945, 110
  %v951 = vpop.permute.xlu0 %950
  %v952 = vsel %vm121, %v949, %v951
  %v955 = vadd.f32 %v942, %v952
  %v956 = vadd.f32 %v943, %v951
  %v957 = vmul.f32 %v500, %v881
  %v958 = vmul.f32 %v500, %v885
  %961 = vrot.lane.b32.xlu0 %v957, 96
  %v962 = vpop.permute.xlu0 %961
  %963 = vrot.lane.b32.xlu0 %v958, 96
  %v964 = vpop.permute.xlu0 %963
  %v965 = vsel %vm139, %v962, %v964
  %v968 = vadd.f32 %v955, %v965
  %v969 = vadd.f32 %v956, %v964
  %v970 = vld [vmem:[%s875] ss:$4 sm:$0x7]
  %v972 = vlaneseq
  %v973 = vshrl.u32 %v972, 7
  %v974 = vsub.s32 0, %v973
  %v975 = vrot.slane %v970, %v974
  %v976 = vlaneseq
  %v977 = vshrl.u32 %v976, 7
  %v978 = vsub.s32 1, %v977
  %v979 = vrot.slane %v970, %v978
  %v980 = vlaneseq
  %v981 = vshrl.u32 %v980, 7
  %v982 = vsub.s32 2, %v981
  %v983 = vrot.slane %v970, %v982
  %v987 = vmul.f32 %v518, %v975
  %v988 = vmul.f32 %v518, %v979
  %v989 = vmul.f32 %v518, %v983
  %993 = vrot.lane.b32.xlu0 %v987, 95
  %v994 = vpop.permute.xlu0 %993
  %995 = vrot.lane.b32.xlu0 %v988, 95
  %v996 = vpop.permute.xlu0 %995
  %997 = vrot.lane.b32.xlu0 %v989, 95
  %v998 = vpop.permute.xlu0 %997
  %v999 = vsel %vm178, %v994, %v996
  %v1000 = vsel %vm178, %v996, %v998
  %v1003 = vadd.f32 %v968, %v999
  %v1004 = vadd.f32 %v969, %v1000
  %v1005 = vmul.f32 %v556, %v975
  %v1006 = vmul.f32 %v556, %v979
  %v1007 = vmul.f32 %v556, %v983
  %1011 = vrot.lane.b32.xlu0 %v1005, 94
  %v1012 = vpop.permute.xlu0 %1011
  %1013 = vrot.lane.b32.xlu0 %v1006, 94
  %v1014 = vpop.permute.xlu0 %1013
  %1015 = vrot.lane.b32.xlu0 %v1007, 94
  %v1016 = vpop.permute.xlu0 %1015
  %v1017 = vsel %vm201, %v1012, %v1014
  %v1018 = vsel %vm201, %v1014, %v1016
  %v1021 = vadd.f32 %v1003, %v1017
  %v1022 = vadd.f32 %v1004, %v1018
  %s1023 = scalar_lea.vmem %s2, 16
  %1024 = vst [vmem:[%s1023] sm:$0x3f] %v1021
  %1025 = vst.msk [vmem:[%s1023 + $0x8] sm:$0x3f] %vm577, %v1022
  // Predicated region
  $region10: #{tudui_forward.1} parent=0 // pred_check
    _
  $region11: #{tudui_forward.1} parent=0 // pred_check_branch
    %1027 = sbr.rel (0) target = $region13
  $region12: #{tudui_forward.1} parent=0 // pred_region
    _
  $region13: #{tudui_forward.1} parent=0 // pred_fallthru
    _
  // Predicated region
  $region14: #{tudui_forward.1} parent=0 // pred_check
    _
  $region15: #{tudui_forward.1} parent=0 // pred_check_branch
    %1029 = sbr.rel (0) target = $region17
  $region16: #{tudui_forward.1} parent=0 // pred_region
    _
  $region17: #{tudui_forward.1} parent=0 // pred_fallthru
    _

</llo_original>
